<compile_context>
chip_gen: v7x
topology: tpu7x:2x2x1
jax: 0.10.0
libtpu: 0.0.40
codegen_flags: <defaults>
</compile_context>

<pallas_src>
import functools

import jax
import jax.numpy as jnp
from jax import lax
from jax.experimental import pallas as pl
from jax.experimental.pallas import tpu as pltpu

# The PyTorch module references module-level constants ALPHA, GAMMA.
# Standard focal-loss defaults (deterministic, set in-script):
ALPHA = 0.8
GAMMA = 2.0

_LANES = 128
_MAX_BLOCK_ROWS = 4096   # 4096*128*4B = 2 MiB per input block
_NCORES = 2              # leading "parallel" grid axis (v7x megacore split)


def _round_up(x, m):
    return (x + m - 1) // m * m


def _bce_sum_kernel(x_ref, t_ref, o_ref, acc_ref, *,
                    n, block_rows, blocks_per_core):
    c = pl.program_id(0)   # core-split axis ("parallel")
    j = pl.program_id(1)   # block axis within this core ("arbitrary")

    @pl.when(j == 0)
    def _():
        acc_ref[...] = jnp.zeros_like(acc_ref)

    z = x_ref[...].astype(jnp.float32)
    t = t_ref[...].astype(jnp.float32)

    # Stable BCE-with-logits:  -(t*log(sigmoid(z)) + (1-t)*log(1-sigmoid(z)))
    #                        =  max(z,0) - z*t + log(1 + exp(-|z|))
    bce = (jnp.maximum(z, 0.0) - z * t
           + jnp.log(1.0 + jnp.exp(-jnp.abs(z))))

    # Exact tail handling: mask elements whose flat index >= n.  Also zeroes
    # the contribution of any duplicated/clamped block on the parallel split.
    block_idx = c * blocks_per_core + j          # logical (unclamped) block id
    rem = n - block_idx * (block_rows * _LANES)  # valid elements in this block
    row = lax.broadcasted_iota(jnp.int32, (block_rows, _LANES), 0)
    lane = lax.broadcasted_iota(jnp.int32, (block_rows, _LANES), 1)
    bce = jnp.where((row * _LANES + lane) < rem, bce, 0.0)

    # Lane-resident partial sums: (block_rows,128) -> (8,128) via VPU adds only.
    acc_ref[...] += jnp.sum(bce.reshape(block_rows // 8, 8, _LANES), axis=0)

    @pl.when(j == pl.num_programs(1) - 1)
    def _():
        o_ref[0] = acc_ref[...]


def focal_loss(inputs, targets, alpha=ALPHA, gamma=GAMMA, smooth=1):
    """Pallas implementation of FocalLoss.forward (returns f32 scalar).

    `inputs` are raw logits (sigmoid is applied inside, as in the module).
    `smooth` is accepted for signature parity but unused (as in the module).
    """
    x = jnp.reshape(inputs, (-1,))
    t = jnp.reshape(targets, (-1,))
    n = x.shape[0]

    # Only a tiny lane-alignment pad (no-op when n % 128 == 0); no dtype cast
    # here — the kernel casts per block, so bf16/int inputs stream at their
    # native width.
    pad = (-n) % _LANES
    if pad:
        x = jnp.pad(x, (0, pad))
        t = jnp.pad(t, (0, pad))
    rows = (n + pad) // _LANES
    x2 = x.reshape(rows, _LANES)
    t2 = t.reshape(rows, _LANES)

    block_rows = min(_MAX_BLOCK_ROWS, _round_up(rows, 8))
    total_blocks = pl.cdiv(rows, block_rows)
    blocks_per_core = pl.cdiv(total_blocks, _NCORES)

    def in_map(c, j):
        # Clamp so the DMA window never starts fully out of bounds; the
        # in-kernel mask zeroes any duplicated block's contribution.
        return (jnp.minimum(c * blocks_per_core + j, total_blocks - 1), 0)

    kernel = functools.partial(
        _bce_sum_kernel, n=n, block_rows=block_rows,
        blocks_per_core=blocks_per_core)

    partials = pl.pallas_call(
        kernel,
        out_shape=jax.ShapeDtypeStruct((_NCORES, 8, _LANES), jnp.float32),
        grid_spec=pltpu.PrefetchScalarGridSpec(
            num_scalar_prefetch=0,
            grid=(_NCORES, blocks_per_core),
            in_specs=[
                pl.BlockSpec((block_rows, _LANES), in_map),
                pl.BlockSpec((block_rows, _LANES), in_map),
            ],
            out_specs=pl.BlockSpec((1, 8, _LANES), lambda c, j: (c, 0, 0)),
            scratch_shapes=[pltpu.VMEM((8, _LANES), jnp.float32)],
        ),
        compiler_params=pltpu.CompilerParams(
            dimension_semantics=("parallel", "arbitrary"),
            vmem_limit_bytes=32 * 1024 * 1024),
    )(x2, t2)

    # Final (tiny) reduction + scalar focal math in plain JAX.
    bce_mean = jnp.sum(partials) / n
    bce_exp = jnp.exp(-bce_mean)
    return alpha * jnp.maximum(1.0 - bce_exp, 0.0) ** gamma * bce_mean


def _reference(inputs, targets, alpha=ALPHA, gamma=GAMMA):
    """Pure-JAX mirror of the PyTorch forward (sigmoid + mean BCE + focal)."""
    z = jnp.reshape(inputs, (-1,)).astype(jnp.float32)
    t = jnp.reshape(targets, (-1,)).astype(jnp.float32)
    p = 1.0 / (1.0 + jnp.exp(-z))
    bce = jnp.mean(-(t * jnp.log(p) + (1.0 - t) * jnp.log(1.0 - p)))
    bce_exp = jnp.exp(-bce)
    return alpha * (1.0 - bce_exp) ** gamma * bce


if __name__ == "__main__":
    key = jax.random.PRNGKey(0)
    k1, k2 = jax.random.split(key)

    # NCHW logits / binary targets, as the PyTorch loss expects.
    B, C, H, W = 2, 4, 16, 16
    logits = jax.random.normal(k1, (B, C, H, W), dtype=jnp.float32)
    targets = (jax.random.uniform(k2, (B, C, H, W)) > 0.5).astype(jnp.float32)

    loss = jax.block_until_ready(focal_loss(logits, targets))
    ref = jax.block_until_ready(_reference(logits, targets))

    assert jnp.allclose(loss, ref, rtol=1e-5, atol=1e-6), (loss, ref)
    print("KERNEL_OK")
</pallas_src>

<mosaic_0001>
module attributes {stable_mosaic.version = 11 : i64} {
  func.func @_bce_sum_kernel(%arg0: i32, %arg1: i32, %arg2: memref<16x128xf32, #tpu.memory_space<vmem>>, %arg3: memref<16x128xf32, #tpu.memory_space<vmem>>, %arg4: memref<1x8x128xf32, #tpu.memory_space<vmem>>, %arg5: memref<8x128xf32, #tpu.memory_space<vmem>>) attributes {dimension_semantics = [#tpu.dimension_semantics<parallel>, #tpu.dimension_semantics<arbitrary>], iteration_bounds = array<i64: 2, 1>, scalar_prefetch = 0 : i64, scratch_operands = 1 : i64, tpu.core_type = #tpu.core_type<tc>, window_params = [{transform_indices = @transform_0, window_bounds = array<i64: 16, 128>}, {transform_indices = @transform_1, window_bounds = array<i64: 16, 128>}, {transform_indices = @transform_2, window_bounds = array<i64: 1, 8, 128>}]} {
    %c0_i32 = arith.constant 0 : i32
    %0 = arith.cmpi eq, %arg1, %c0_i32 : i32
    %1 = arith.extui %0 : i1 to i32
    %c0_i32_0 = arith.constant 0 : i32
    %2 = arith.cmpi ne, %1, %c0_i32_0 : i32
    scf.if %2 {
      %cst_15 = arith.constant 0.000000e+00 : f32
      %38 = vector.broadcast %cst_15 : f32 to vector<8x128xf32>
      %c0_16 = arith.constant 0 : index
      %c0_17 = arith.constant 0 : index
      %39 = vector.load %arg5[%c0_16, %c0_17] : memref<8x128xf32, #tpu.memory_space<vmem>>, vector<8x128xf32>
      tpu.vector_store %arg5[%c0_16, %c0_17], %38 {strides = array<i32>} : memref<8x128xf32, #tpu.memory_space<vmem>>, vector<8x128xf32>,
    } else {
    }
    %c0 = arith.constant 0 : index
    %c0_1 = arith.constant 0 : index
    %3 = vector.load %arg2[%c0, %c0_1] : memref<16x128xf32, #tpu.memory_space<vmem>>, vector<16x128xf32>
    %c0_2 = arith.constant 0 : index
    %c0_3 = arith.constant 0 : index
    %4 = vector.load %arg3[%c0_2, %c0_3] : memref<16x128xf32, #tpu.memory_space<vmem>>, vector<16x128xf32>
    %cst = arith.constant 0.000000e+00 : f32
    %5 = vector.broadcast %cst : f32 to vector<16x128xf32>
    %6 = arith.maximumf %3, %5 : vector<16x128xf32>
    %7 = arith.mulf %3, %4 : vector<16x128xf32>
    %8 = arith.subf %6, %7 : vector<16x128xf32>
    %9 = math.absf %3 : vector<16x128xf32>
    %cst_4 = arith.constant 0.000000e+00 : f32
    %10 = vector.broadcast %cst_4 : f32 to vector<16x128xf32>
    %11 = arith.subf %10, %9 : vector<16x128xf32>
    %12 = math.exp %11 : vector<16x128xf32>
    %cst_5 = arith.constant 1.000000e+00 : f32
    %13 = vector.broadcast %cst_5 : f32 to vector<16x128xf32>
    %14 = arith.addf %13, %12 : vector<16x128xf32>
    %15 = math.log %14 : vector<16x128xf32>
    %16 = arith.addf %8, %15 : vector<16x128xf32>
    %c1_i32 = arith.constant 1 : i32
    %17 = arith.muli %arg0, %c1_i32 : i32
    %18 = arith.addi %17, %arg1 : i32
    %c2048_i32 = arith.constant 2048 : i32
    %19 = arith.muli %18, %c2048_i32 : i32
    %c2048_i32_6 = arith.constant 2048 : i32
    %20 = arith.subi %c2048_i32_6, %19 : i32
    %21 = tpu.iota {dimensions = array<i32: 0>} : vector<16x128xi32>
    %22 = tpu.iota {dimensions = array<i32: 1>} : vector<16x128xi32>
    %c128_i32 = arith.constant 128 : i32
    %23 = vector.broadcast %c128_i32 : i32 to vector<16x128xi32>
    %24 = arith.muli %21, %23 : vector<16x128xi32>
    %25 = arith.addi %24, %22 : vector<16x128xi32>
    %26 = vector.broadcast %20 : i32 to vector<16x128xi32>
    %27 = arith.cmpi slt, %25, %26 : vector<16x128xi32>
    %cst_7 = arith.constant 0.000000e+00 : f32
    %28 = vector.broadcast %cst_7 : f32 to vector<16x128xf32>
    %29 = arith.select %27, %16, %28 : vector<16x128xi1>, vector<16x128xf32>
    %c0_8 = arith.constant 0 : index
    %c0_9 = arith.constant 0 : index
    %30 = vector.load %arg5[%c0_8, %c0_9] : memref<8x128xf32, #tpu.memory_space<vmem>>, vector<8x128xf32>
    %31 = vector.shape_cast %29 : vector<16x128xf32> to vector<2x8x128xf32>
    %cst_10 = arith.constant dense<0.000000e+00> : vector<8x128xf32>
    %32 = vector.multi_reduction <add>, %31, %cst_10 [0] : vector<2x8x128xf32> to vector<8x128xf32>
    %33 = arith.addf %30, %32 : vector<8x128xf32>
    %c0_11 = arith.constant 0 : index
    %c0_12 = arith.constant 0 : index
    %34 = vector.load %arg5[%c0_11, %c0_12] : memref<8x128xf32, #tpu.memory_space<vmem>>, vector<8x128xf32>
    tpu.vector_store %arg5[%c0_11, %c0_12], %33 {strides = array<i32>} : memref<8x128xf32, #tpu.memory_space<vmem>>, vector<8x128xf32>,
    %c0_i32_13 = arith.constant 0 : i32
    %35 = arith.cmpi eq, %arg1, %c0_i32_13 : i32
    %36 = arith.extui %35 : i1 to i32
    %c0_i32_14 = arith.constant 0 : i32
    %37 = arith.cmpi ne, %36, %c0_i32_14 : i32
    scf.if %37 {
      %c0_15 = arith.constant 0 : index
      %c0_16 = arith.constant 0 : index
      %38 = vector.load %arg5[%c0_15, %c0_16] : memref<8x128xf32, #tpu.memory_space<vmem>>, vector<8x128xf32>
      %c0_17 = arith.constant 0 : index
      %c0_18 = arith.constant 0 : index
      %c0_19 = arith.constant 0 : index
      %39 = vector.load %arg4[%c0_17, %c0_18, %c0_19] : memref<1x8x128xf32, #tpu.memory_space<vmem>>, vector<1x8x128xf32>
      %40 = vector.shape_cast %39 : vector<1x8x128xf32> to vector<8x128xf32>
      %41 = vector.shape_cast %38 : vector<8x128xf32> to vector<1x8x128xf32>
      tpu.vector_store %arg4[%c0_17, %c0_18, %c0_19], %41 {strides = array<i32>} : memref<1x8x128xf32, #tpu.memory_space<vmem>>, vector<1x8x128xf32>,
    } else {
    }
    return
  }
  func.func @transform_0(%arg0: i32, %arg1: i32) -> (i32, i32) {
    %c1_i32 = arith.constant 1 : i32
    %0 = arith.muli %arg0, %c1_i32 : i32
    %1 = arith.addi %0, %arg1 : i32
    %c0_i32 = arith.constant 0 : i32
    %2 = arith.minsi %1, %c0_i32 : i32
    %c0_i32_0 = arith.constant 0 : i32
    %c0_i32_1 = arith.constant 0 : i32
    return %2, %c0_i32_0 : i32, i32
  }
  func.func @transform_1(%arg0: i32, %arg1: i32) -> (i32, i32) {
    %c1_i32 = arith.constant 1 : i32
    %0 = arith.muli %arg0, %c1_i32 : i32
    %1 = arith.addi %0, %arg1 : i32
    %c0_i32 = arith.constant 0 : i32
    %2 = arith.minsi %1, %c0_i32 : i32
    %c0_i32_0 = arith.constant 0 : i32
    %c0_i32_1 = arith.constant 0 : i32
    return %2, %c0_i32_0 : i32, i32
  }
  func.func @transform_2(%arg0: i32, %arg1: i32) -> (i32, i32, i32) {
    %c0_i32 = arith.constant 0 : i32
    %c0_i32_0 = arith.constant 0 : i32
    %c0_i32_1 = arith.constant 0 : i32
    return %arg0, %c0_i32, %c0_i32_0 : i32, i32, i32
  }
}

</mosaic_0001>

<llo_original>
// kernel: tpu_custom_call.1
$region0: #{tpu_custom_call.1}
  #allocation0 [shape = 'u32[]', space=smem, size = 0x4, offset = 0x4, fixed_abs, tag = 'smem constant byte address 0x4 - core index']
  #allocation1 [shape = 'u32[144,128]{1,0:T(1,128)}', space=vmem, size = 0x12000, scoped, tag = 'internal scratch']
  #allocation2 [shape = 'f32[8,128]{1,0:T(8,128)}', space=vmem, size = 0x1000, scoped, tag = 'scratch operand']
  %s0 = inlined_call_operand.hbm [shape: f32[16,128], index: 0, kind: input, shape index: {}]
  %s1 = inlined_call_operand.hbm [shape: f32[16,128], index: 1, kind: input, shape index: {}]
  %s2 = inlined_call_operand.hbm [shape: f32[2,8,128], index: 2, kind: output, shape index: {}]
  %s3 = sld [smem:[#allocation0]]
  $region57: #{tpu_custom_call.1} parent=0
    _
  %s5 = ssub.s32 1, %s3
  %s6 = scalar_select 0, %s5, %s3
  $region1: #{tpu_custom_call.1} parent=0
    #allocation3 [shape = 'u8[16384]{0}', space=vmem, size = 0x4000, scoped, tag = 'input window, operand 0']
    #allocation4 [shape = 's32[2]{0}', space=sflag, size = 0x8, scoped, tag = 'scoped memory for tpu_custom_call.1']
    #allocation5 [shape = 's32[2]{0}', space=sflag, size = 0x8, scoped, tag = 'scoped memory for tpu_custom_call.1']
    #allocation6 [shape = 'u8[16384]{0}', space=vmem, size = 0x4000, scoped, tag = 'input window, operand 1']
    #allocation7 [shape = 's32[2]{0}', space=sflag, size = 0x8, scoped, tag = 'scoped memory for tpu_custom_call.1']
    #allocation8 [shape = 'u8[8192]{0}', space=vmem, size = 0x2000, scoped, tag = 'output window, operand 0']
    %7 = vsyncpa [#allocation4], 0
    %s8 = scalar_lea.sflag [#allocation4], 1
    %9 = vsyncpa %s8, 0
    %10 = vsyncpa [#allocation7], 0
    %s11 = scalar_lea.sflag [#allocation7], 1
    %12 = vsyncpa %s11, 0
    %13 = vsyncpa [#allocation5], 0
    %s14 = scalar_lea.sflag [#allocation5], 1
    %15 = vsyncpa %s14, 0
    loop: start=0, step=1, limit=4
    $region2: #{tpu_custom_call.1} parent=1 // loop_pre_header
      _
    $region3: #{tpu_custom_call.1} parent=1 // loop_header
      %s17 = sphi 0, %s21
      %p18 = scmp.ge.s32.totalorder %s17, 4
      %s24 = sphi 0, %s36
      %s25 = sphi 0, %s32
      %s26 = sphi 0, %s24
      %s27 = sphi 0, %s25
      %s28 = sphi 0, %s26
      %s29 = sphi 0, %s27
      %s45 = sphi 0, %s47
      %s48 = sphi 0, %s45
      %s49 = sphi 0, %s48
      %s65 = sphi 0, %s49
      %s77 = sphi 0, %s79
      %s80 = sphi 0, %s77
      %s81 = sphi 0, %s80
      %s97 = sphi 0, %s81
      %s103 = sphi 0, %s105
      %s106 = sphi 0, %s103
      %s107 = sphi 0, %s106
      %s123 = sphi 0, %s107
    $region4: #{tpu_custom_call.1} parent=1 // loop_header_branch
      %20 = sbr.rel (%p18) target = $region8
    $region5: #{tpu_custom_call.1} parent=1 // loop_body
      %s22 = ssub.s32 %s17, 1
      %s23 = ssub.s32 %s17, 2
      %s30 = sadd.s32 1, %s25
      %p31 = scmp.ge.s32.totalorder %s30, 1
      %s32 = scalar_select %p31, 0, %s30
      %s33 = sadd.s32 1, %s24
      %s34 = scalar_select %p31, %s33, %s24
      %p35 = scmp.ge.s32.totalorder %s34, 2
      %s36 = scalar_select %p35, 0, %s34
      %s37 = sadd.s32 %s24, %s25
      %p38 = scmp.lt.s32.totalorder %s37, 0
      %s39 = scalar_select %p38, %s37, 0
      %s40 = sadd.s32 %s36, %s32
      %p41 = scmp.lt.s32.totalorder %s40, 0
      %s42 = scalar_select %p41, %s40, 0
      %s43 = ssub.s32 %s39, %s42
      %p44 = scmp.eq.s32.totalorder %s43, 0
      %s46 = sadd.s32 %s45, 1
      %s47 = scalar_select %p44, %s45, %s46
      %p50 = pneg %p44
      %p51 = scmp.eq.s32.totalorder %s17, 1
      %p52 = por %p50, %p51
      %p53 = scmp.ne.s32.totalorder %s45, %s48
      %p54 = scmp.eq.s32.totalorder %s17, 0
      %p55 = por %p53, %p54
      %p56 = scmp.ne.s32.totalorder %s45, %s48
      %p57 = scmp.eq.s32.totalorder %s22, 1
      %p58 = por %p56, %p57
      %p59 = scmp.ne.s32.totalorder %s48, %s49
      %p60 = scmp.eq.s32.totalorder %s22, 0
      %p61 = por %p59, %p60
      %p62 = scmp.ne.s32.totalorder %s48, %s49
      %p63 = scmp.eq.s32.totalorder %s23, 1
      %p64 = por %p62, %p63
      %p66 = scmp.ne.s32.totalorder %s49, %s65
      %p67 = scmp.eq.s32.totalorder %s23, 0
      %p68 = por %p66, %p67
      %s69 = sadd.s32 %s24, %s25
      %p70 = scmp.lt.s32.totalorder %s69, 0
      %s71 = scalar_select %p70, %s69, 0
      %s72 = sadd.s32 %s36, %s32
      %p73 = scmp.lt.s32.totalorder %s72, 0
      %s74 = scalar_select %p73, %s72, 0
      %s75 = ssub.s32 %s71, %s74
      %p76 = scmp.eq.s32.totalorder %s75, 0
      %s78 = sadd.s32 %s77, 1
      %s79 = scalar_select %p76, %s77, %s78
      %p82 = pneg %p76
      %p83 = scmp.eq.s32.totalorder %s17, 1
      %p84 = por %p82, %p83
      %p85 = scmp.ne.s32.totalorder %s77, %s80
      %p86 = scmp.eq.s32.totalorder %s17, 0
      %p87 = por %p85, %p86
      %p88 = scmp.ne.s32.totalorder %s77, %s80
      %p89 = scmp.eq.s32.totalorder %s22, 1
      %p90 = por %p88, %p89
      %p91 = scmp.ne.s32.totalorder %s80, %s81
      %p92 = scmp.eq.s32.totalorder %s22, 0
      %p93 = por %p91, %p92
      %p94 = scmp.ne.s32.totalorder %s80, %s81
      %p95 = scmp.eq.s32.totalorder %s23, 1
      %p96 = por %p94, %p95
      %p98 = scmp.ne.s32.totalorder %s81, %s97
      %p99 = scmp.eq.s32.totalorder %s23, 0
      %p100 = por %p98, %p99
      %s101 = ssub.s32 %s24, %s36
      %p102 = scmp.eq.s32.totalorder %s101, 0
      %s104 = sadd.s32 %s103, 1
      %s105 = scalar_select %p102, %s103, %s104
      %p108 = pneg %p102
      %p109 = scmp.eq.s32.totalorder %s17, 1
      %p110 = por %p108, %p109
      %p111 = scmp.ne.s32.totalorder %s103, %s106
      %p112 = scmp.eq.s32.totalorder %s17, 0
      %p113 = por %p111, %p112
      %p114 = scmp.ne.s32.totalorder %s103, %s106
      %p115 = scmp.eq.s32.totalorder %s22, 1
      %p116 = por %p114, %p115
      %p117 = scmp.ne.s32.totalorder %s106, %s107
      %p118 = scmp.eq.s32.totalorder %s22, 0
      %p119 = por %p117, %p118
      %p120 = scmp.ne.s32.totalorder %s106, %s107
      %p121 = scmp.eq.s32.totalorder %s23, 1
      %p122 = por %p120, %p121
      %p124 = scmp.ne.s32.totalorder %s107, %s123
      %p125 = scmp.eq.s32.totalorder %s23, 0
      %p126 = por %p124, %p125
      %p127 = scmp.le.s32.totalorder 1, %s17
      %p128 = scmp.lt.s32.totalorder %s17, 3
      %p129 = pnand %p127, %p128
      %p130 = pneg %p129
      // Predicated region
      $region9: #{tpu_custom_call.1} parent=5 // pred_check
        _
      $region10: #{tpu_custom_call.1} parent=5 // pred_check_branch
        %132 = sbr.rel (%p129) target = $region12
      $region11: #{tpu_custom_call.1} parent=5 // pred_region
        %s133 = ssub.s32 %s17, 1
      $region12: #{tpu_custom_call.1} parent=5 // pred_fallthru
        _
      %p134 = scmp.lt.s32.totalorder %s17, 2
      // Predicated region
      $region13: #{tpu_custom_call.1} parent=5 // pred_check
        %p135 = pneg %p134
      $region14: #{tpu_custom_call.1} parent=5 // pred_check_branch
        %137 = sbr.rel (%p135) target = $region16
      $region15: #{tpu_custom_call.1} parent=5 // pred_region
        // Predicated region
        $region17: #{tpu_custom_call.1} parent=15 // pred_check
          %p138 = pneg %p55
        $region18: #{tpu_custom_call.1} parent=15 // pred_check_branch
          %140 = sbr.rel (%p138) target = $region20
        $region19: #{tpu_custom_call.1} parent=15 // pred_region
          %s141 = sand.u32 %s45, 1
          %s142 = scalar_lea.sflag [#allocation4], %s141
          %s143 = sand.u32 %s45, 1
          %s144 = smul.addr %s143, 16
          %s145 = scalar_lea.vmem [#allocation3], %s144
          %s146 = sadd.s32 %s24, %s25
          %p147 = scmp.lt.s32.totalorder %s146, 0
          %s148 = scalar_select %p147, %s146, 0
          %s149 = smul.u32 2, %s148
          %s151 = ssub.s32 256, 256
          %152 = vsyncadd %s142, %s151
          %s153 = smul.addr %s149, 128
          %s154 = scalar_lea.hbm %s0, %s153
          %s155 = sshll.u32 %s145, 4
          %s156 = int_to_ptr.vmem [resolvable:$true] %s155
          %161 = dma.hbm_to_vmem [thread:$0]  %s154, 256, %s156, %s142, 128, 128, 8
        $region20: #{tpu_custom_call.1} parent=15 // pred_fallthru
          _
        // Predicated region
        $region21: #{tpu_custom_call.1} parent=15 // pred_check
          %p162 = pneg %p87
        $region22: #{tpu_custom_call.1} parent=15 // pred_check_branch
          %164 = sbr.rel (%p162) target = $region24
        $region23: #{tpu_custom_call.1} parent=15 // pred_region
          %s165 = sand.u32 %s77, 1
          %s166 = scalar_lea.sflag [#allocation7], %s165
          %s167 = sand.u32 %s77, 1
          %s168 = smul.addr %s167, 16
          %s169 = scalar_lea.vmem [#allocation6], %s168
          %s170 = sadd.s32 %s24, %s25
          %p171 = scmp.lt.s32.totalorder %s170, 0
          %s172 = scalar_select %p171, %s170, 0
          %s173 = smul.u32 2, %s172
          %s175 = ssub.s32 256, 256
          %176 = vsyncadd %s166, %s175
          %s177 = smul.addr %s173, 128
          %s178 = scalar_lea.hbm %s1, %s177
          %s179 = sshll.u32 %s169, 4
          %s180 = int_to_ptr.vmem [resolvable:$true] %s179
          %185 = dma.hbm_to_vmem [thread:$0]  %s178, 256, %s180, %s166, 128, 128, 8
        $region24: #{tpu_custom_call.1} parent=15 // pred_fallthru
          _
      $region16: #{tpu_custom_call.1} parent=5 // pred_fallthru
        _
      %p186 = scmp.le.s32.totalorder 1, %s17
      %p187 = scmp.lt.s32.totalorder %s17, 3
      %p188 = pnand %p186, %p187
      %p189 = pneg %p188
      // Predicated region
      $region25: #{tpu_custom_call.1} parent=5 // pred_check
        _
      $region26: #{tpu_custom_call.1} parent=5 // pred_check_branch
        %191 = sbr.rel (%p188) target = $region28
      $region27: #{tpu_custom_call.1} parent=5 // pred_region
        %s192 = ssub.s32 %s17, 1
        %s193 = sand.u32 %s48, 1
        %s194 = scalar_lea.sflag [#allocation4], %s193
        %s195 = sand.u32 %s48, 1
        %s196 = smul.addr %s195, 16
        %s197 = scalar_lea.vmem [#allocation3], %s196
        // Predicated region
        $region29: #{tpu_custom_call.1} parent=27 // pred_check
          %p198 = pneg %p61
        $region30: #{tpu_custom_call.1} parent=27 // pred_check_branch
          %200 = sbr.rel (%p198) target = $region32
        $region31: #{tpu_custom_call.1} parent=27 // pred_region
          %201 = dma.done %s194, 256
        $region32: #{tpu_custom_call.1} parent=27 // pred_fallthru
          _
        %s202 = sand.u32 %s80, 1
        %s203 = scalar_lea.sflag [#allocation7], %s202
        %s204 = sand.u32 %s80, 1
        %s205 = smul.addr %s204, 16
        %s206 = scalar_lea.vmem [#allocation6], %s205
        // Predicated region
        $region33: #{tpu_custom_call.1} parent=27 // pred_check
          %p207 = pneg %p93
        $region34: #{tpu_custom_call.1} parent=27 // pred_check_branch
          %209 = sbr.rel (%p207) target = $region36
        $region35: #{tpu_custom_call.1} parent=27 // pred_region
          %210 = dma.done %s203, 256
        $region36: #{tpu_custom_call.1} parent=27 // pred_fallthru
          _
        %s211 = sand.u32 %s48, 1
        %s212 = scalar_lea.sflag [#allocation4], %s211
        %s213 = sand.u32 %s48, 1
        %s214 = smul.addr %s213, 16
        %s215 = scalar_lea.vmem [#allocation3], %s214
        %p216 = pneg %p61
        %p217 = pneg %p58
        %s218 = sand.u32 %s80, 1
        %s219 = scalar_lea.sflag [#allocation7], %s218
        %s220 = sand.u32 %s80, 1
        %s221 = smul.addr %s220, 16
        %s222 = scalar_lea.vmem [#allocation6], %s221
        %p223 = pneg %p93
        %p224 = pneg %p90
        %p225 = pneg %p119
        %p226 = pneg %p116
        %s227 = sand.u32 %s106, 1
        %s228 = scalar_lea.sflag [#allocation5], %s227
        %s229 = sand.u32 %s106, 1
        %s230 = smul.addr %s229, 8
        %s231 = scalar_lea.vmem [#allocation8], %s230
        %s232 = sadd.s32 %s26, %s27
        %p233 = scmp.lt.s32.totalorder %s232, 0
        %s234 = scalar_select %p233, %s232, 0
        %s235 = smul.u32 2, %s234
        %s236 = sadd.s32 %s26, %s27
        %p237 = scmp.lt.s32.totalorder %s236, 0
        %s238 = scalar_select %p237, %s236, 0
        %s239 = smul.u32 2, %s238
        %p240 = scmp.eq.s32.totalorder %s27, 0
        // Predicated region
        $region37: #{tpu_custom_call.1} parent=27 // pred_check
          %p241 = pneg %p240
        $region38: #{tpu_custom_call.1} parent=27 // pred_check_branch
          %243 = sbr.rel (%p241) target = $region40
        $region39: #{tpu_custom_call.1} parent=27 // pred_region
          %244 = vst [vmem:[#allocation2] sm:$0xff] 0.0
        $region40: #{tpu_custom_call.1} parent=27 // pred_fallthru
          _
        %v245 = vld [vmem:[%s197] sm:$0xff]
        %v246 = vld [vmem:[%s197 + $0x8] sm:$0xff]
        %v247 = vld [vmem:[%s206] sm:$0xff]
        %v248 = vld [vmem:[%s206 + $0x8] sm:$0xff]
        %v249 = vmax.f32 %v245, 0.0
        %v250 = vmax.f32 %v246, 0.0
        %v251 = vmul.f32 %v245, %v247
        %v252 = vmul.f32 %v246, %v248
        %v253 = vsub.f32 %v249, %v251
        %v254 = vsub.f32 %v250, %v252
        %v255 = vand.u32 2147483647, %v245
        %v256 = vand.u32 2147483647, %v246
        %v257 = vsub.f32 0.0, %v255
        %v258 = vsub.f32 0.0, %v256
        %v259 = vmul.f32 %v257, 1.442695
        %v260 = vpow.pop %v259
        %v261 = vmul.f32 %v258, 1.442695
        %v262 = vpow.pop %v261
        %v263 = vadd.f32 %v260, 1.0
        %v264 = vadd.f32 %v262, 1.0
        %v265 = vlog2.pop %v263
        %v266 = vmul.f32 %v265, 0.6931472
        %v267 = vlog2.pop %v264
        %v268 = vmul.f32 %v267, 0.6931472
        %v269 = vadd.f32 %v253, %v266
        %v270 = vadd.f32 %v254, %v268
        %s271 = sadd.s32 %s26, %s27
        %s272 = smul.u32 %s271, 2048
        %s273 = ssub.s32 2048, %s272
        %v274 = vlaneseq
        %v275 = vshrl.u32 %v274, 7
        %v276 = vadd.s32 %v275, 8
        %v277 = vlaneseq
        %v278 = vand.u32 %v277, 127
        %v279 = vmul.u32 %v275, 128
        %v280 = vmul.u32 %v276, 128
        %v281 = vadd.s32 %v279, %v278
        %v282 = vadd.s32 %v280, %v278
        %v283 = vstv %s273
        %vm284 = vcmp.lt.s32.totalorder %v281, %v283
        %vm285 = vcmp.lt.s32.totalorder %v282, %v283
        %v286 = vsel %vm284, %v269, 0.0
        %v287 = vsel %vm285, %v270, 0.0
        %v288 = vld [vmem:[#allocation2] sm:$0xff]
        %v289 = vadd.f32 %v286, %v287
        %v290 = vadd.f32 %v288, %v289
        %291 = vst [vmem:[#allocation2] sm:$0xff] %v290
        // Predicated region
        $region41: #{tpu_custom_call.1} parent=27 // pred_check
          %p292 = pneg %p240
        $region42: #{tpu_custom_call.1} parent=27 // pred_check_branch
          %294 = sbr.rel (%p292) target = $region44
        $region43: #{tpu_custom_call.1} parent=27 // pred_region
          %v295 = vld [vmem:[#allocation2] sm:$0xff]
          %296 = vst [vmem:[%s231] sm:$0xff] %v295
        $region44: #{tpu_custom_call.1} parent=27 // pred_fallthru
          _
        %s297 = sand.u32 %s106, 1
        %s298 = scalar_lea.sflag [#allocation5], %s297
        %s299 = sand.u32 %s106, 1
        %s300 = smul.addr %s299, 8
        %s301 = scalar_lea.vmem [#allocation8], %s300
        // Predicated region
        $region45: #{tpu_custom_call.1} parent=27 // pred_check
          %p302 = pneg %p116
        $region46: #{tpu_custom_call.1} parent=27 // pred_check_branch
          %304 = sbr.rel (%p302) target = $region48
        $region47: #{tpu_custom_call.1} parent=27 // pred_region
          %s306 = ssub.s32 128, 128
          %307 = vsyncadd %s298, %s306
          %s308 = smul.addr %s26, 128
          %s309 = scalar_lea.hbm %s2, %s308
          %s311 = sshll.u32 %s301, 4
          %s312 = int_to_ptr.vmem [resolvable:$true] %s311
          %314 = dma.vmem_to_hbm [thread:$0]  %s312, 128, %s309, %s298
        $region48: #{tpu_custom_call.1} parent=27 // pred_fallthru
          _
      $region28: #{tpu_custom_call.1} parent=5 // pred_fallthru
        _
      %p315 = scmp.le.s32.totalorder 2, %s17
      // Predicated region
      $region49: #{tpu_custom_call.1} parent=5 // pred_check
        %p316 = pneg %p315
      $region50: #{tpu_custom_call.1} parent=5 // pred_check_branch
        %318 = sbr.rel (%p316) target = $region52
      $region51: #{tpu_custom_call.1} parent=5 // pred_region
        %s319 = ssub.s32 %s17, 2
        // Predicated region
        $region53: #{tpu_custom_call.1} parent=51 // pred_check
          %p320 = pneg %p122
        $region54: #{tpu_custom_call.1} parent=51 // pred_check_branch
          %322 = sbr.rel (%p320) target = $region56
        $region55: #{tpu_custom_call.1} parent=51 // pred_region
          %s323 = sand.u32 %s107, 1
          %s324 = scalar_lea.sflag [#allocation5], %s323
          %s325 = sand.u32 %s107, 1
          %s326 = smul.addr %s325, 8
          %s327 = scalar_lea.vmem [#allocation8], %s326
          %328 = dma.done %s324, 128
        $region56: #{tpu_custom_call.1} parent=51 // pred_fallthru
          _
      $region52: #{tpu_custom_call.1} parent=5 // pred_fallthru
        _
    $region6: #{tpu_custom_call.1} parent=1 // loop_footer
      %s21 = sadd.s32 1, %s17
    $region7: #{tpu_custom_call.1} parent=1 // loop_footer_branch
      %16 = sbr.rel target = $region3
    $region8: #{tpu_custom_call.1} parent=1 // loop_exit
      _
    %329 = vsyncpa [#allocation4], 1
    %s330 = scalar_lea.sflag [#allocation4], 1
    %331 = vsyncpa %s330, 1
    %332 = vsyncpa [#allocation7], 1
    %s333 = scalar_lea.sflag [#allocation7], 1
    %334 = vsyncpa %s333, 1
    %335 = vsyncpa [#allocation5], 1
    %s336 = scalar_lea.sflag [#allocation5], 1
    %337 = vsyncpa %s336, 1

</llo_original>
